<compile_context>
chip_gen: v5e
topology: v5e:2x2
jax: 0.10.0
libtpu: 0.0.40
codegen_flags: <defaults>
</compile_context>

<pallas_src>
import math
import functools

import jax
import jax.numpy as jnp
from jax.experimental import pallas as pl
from jax.experimental.pallas import tpu as pltpu


# ---------------------------------------------------------------------------
# Head split / merge helpers (torch's cat(split(...), 0) / cat(split(...), 2))
# ---------------------------------------------------------------------------
def _split_heads(x, num_heads, dh):
    """(Bt, S, Dv) -> (H*Bt, S, dh), head-major along the batch axis."""
    return jnp.concatenate(
        [x[:, :, h * dh:(h + 1) * dh] for h in range(num_heads)], axis=0)


def _merge_heads(o, num_heads, bt):
    """(H*Bt, M, dh) -> (Bt, M, H*dh); single lane concatenate per block."""
    return jnp.concatenate(
        [o[h * bt:(h + 1) * bt] for h in range(num_heads)], axis=-1)


# ---------------------------------------------------------------------------
# Shared MAB body (everything after the Q projection), runs once per grid step.
# ---------------------------------------------------------------------------
def _mab_core(Qp, Qh, Xk, kbias, qvalid, wkv, bkv, wo, bo, num_heads):
    # Qp:    (Bt, M, Dv)   f32 projected queries (for the residual)
    # Qh:    (H*Bt, M, dh) bf16 head-split queries (K carries the 1/sqrt(dh) scale)
    # Xk:    (Bt, N, Dk)   bf16 key-side input
    # kbias: (Bt, 1, N)    additive f32 key-mask bias (0 valid / -1e30 masked) or None
    # qvalid:(Bt, M, 1)    f32 query-row validity in {0,1} or None
    Bt, M, Dv = Qp.shape
    N = Xk.shape[1]
    H = num_heads
    dh = Dv // H

    # Fused K|V projection: batch block folded into the matmul M dimension,
    # bf16 operands, f32 accumulation.
    KV = jnp.dot(Xk.reshape(Bt * N, Xk.shape[2]), wkv,
                 preferred_element_type=jnp.float32) + bkv          # (Bt*N, 2*Dv)
    Kh = _split_heads(KV[:, :Dv].astype(jnp.bfloat16).reshape(Bt, N, Dv), H, dh)
    Vh = _split_heads(KV[:, Dv:].astype(jnp.bfloat16).reshape(Bt, N, Dv), H, dh)

    # Head-batched attention: one batched matmul for scores, one for outputs.
    dots = jnp.einsum("bmd,bnd->bmn", Qh, Kh,
                      preferred_element_type=jnp.float32)            # (H*Bt, M, N)
    if kbias is not None:
        # Additive key-mask bias; exp() drives masked entries to exactly 0.
        # (A row with *all* keys masked would differ from torch's uniform
        #  softmax; the ISAB key mask always has >= 1 valid element.)
        kb = jnp.broadcast_to(kbias[None], (H, Bt, 1, N)).reshape(H * Bt, 1, N)
        dots = dots + kb
    if qvalid is not None:
        # torch masked_fill semantics: every entry of a masked query row becomes
        # the same large negative -> uniform softmax for that row.
        qv = jnp.broadcast_to(qvalid[None], (H, Bt, M, 1)).reshape(H * Bt, M, 1)
        dots = jnp.where(qv > 0.5, dots, -jnp.finfo(jnp.float32).max)

    dmax = jnp.max(dots, axis=-1, keepdims=True)
    e = jnp.exp(dots - dmax)                                         # f32 softmax math
    inv = pl.reciprocal(jnp.sum(e, axis=-1, keepdims=True), approx=True)
    A = (e * inv).astype(jnp.bfloat16)
    O = jnp.einsum("bmn,bnd->bmd", A, Vh,
                   preferred_element_type=jnp.float32)               # (H*Bt, M, dh)

    Hres = Qp + _merge_heads(O, H, Bt)                               # (Bt, M, Dv)
    Ho = (jnp.dot(Hres.reshape(Bt * M, Dv).astype(jnp.bfloat16), wo,
                  preferred_element_type=jnp.float32) + bo).reshape(Bt, M, Dv)
    return Hres + jnp.maximum(Ho, 0.0)                               # H + relu(fc_o(H)); ln=False


# ---------------------------------------------------------------------------
# Stage-0 kernel: Q is batch-invariant and pre-projected (and pre-head-split).
# ---------------------------------------------------------------------------
def _mab_preq_kernel(q_ref, qh_ref, x_ref, kbias_ref,
                     wkv_ref, wo_ref, b_ref, out_ref, *, num_heads):
    Bt = x_ref.shape[0]
    M, Dv = q_ref.shape
    dh = Dv // num_heads
    Qp = jnp.broadcast_to(q_ref[...][None], (Bt, M, Dv))
    Qh = jnp.broadcast_to(qh_ref[...][:, None],
                          (num_heads, Bt, M, dh)).reshape(num_heads * Bt, M, dh)
    b = b_ref[...]
    out = _mab_core(Qp, Qh, x_ref[...], kbias_ref[...], None,
                    wkv_ref[...], b[:, :2 * Dv], wo_ref[...], b[:, 2 * Dv:],
                    num_heads)
    out_ref[...] = out.astype(out_ref.dtype)


# ---------------------------------------------------------------------------
# Stage-1 kernel: Q depends on the batch, projected in-kernel.
# ---------------------------------------------------------------------------
def _mab_fullq_kernel(xq_ref, xk_ref, qmask_ref,
                      wq_ref, wkv_ref, wo_ref, b_ref, out_ref, *, num_heads):
    Bt, M, Dq = xq_ref.shape
    Dv = wq_ref.shape[1]
    dh = Dv // num_heads
    b = b_ref[...]
    bq, bkv, bo = b[:, :Dv], b[:, Dv:3 * Dv], b[:, 3 * Dv:]
    Qp = (jnp.dot(xq_ref[...].reshape(Bt * M, Dq), wq_ref[...],
                  preferred_element_type=jnp.float32) + bq).reshape(Bt, M, Dv)
    Qh = _split_heads(Qp.astype(jnp.bfloat16), num_heads, dh)
    out = _mab_core(Qp, Qh, xk_ref[...], None, qmask_ref[...],
                    wkv_ref[...], bkv, wo_ref[...], bo, num_heads)
    out_ref[...] = out.astype(out_ref.dtype)


# ---------------------------------------------------------------------------
# pallas_call wrappers
# ---------------------------------------------------------------------------
def _const_spec(shp):
    return pl.BlockSpec(shp, lambda b: (0,) * len(shp))


def _batched_spec(shp):
    return pl.BlockSpec(shp, lambda b: (b,) + (0,) * (len(shp) - 1))


def _compiler_params(vmem_limit):
    return pltpu.CompilerParams(
        dimension_semantics=("parallel",),       # batch-block axis -> megacore on v7x
        vmem_limit_bytes=int(vmem_limit))


def _mab_call_preq(q0, q0h, xk, kbias, w, *, num_heads, block_b, vmem_limit):
    """MAB with a batch-invariant, pre-projected Q (ISAB stage 0)."""
    B, N, Dk = xk.shape
    M, Dv = q0.shape
    kernel = functools.partial(_mab_preq_kernel, num_heads=num_heads)
    return pl.pallas_call(
        kernel,
        # bf16 output: only ever consumed as stage-1's bf16 key-side input.
        out_shape=jax.ShapeDtypeStruct((B, M, Dv), jnp.bfloat16),
        grid=(B // block_b,),
        in_specs=[
            _const_spec((M, Dv)),                          # hoisted Q0 (f32, residual)
            _const_spec((num_heads, M, Dv // num_heads)),  # hoisted head-split Q0 (bf16)
            _batched_spec((block_b, N, Dk)),               # key-side input X (bf16)
            _batched_spec((block_b, 1, N)),                # additive key-mask bias
            _const_spec((Dk, 2 * Dv)),                     # [Wk|Wv]^T (1/sqrt(dh) folded into Wk)
            _const_spec((Dv, Dv)),                         # Wo^T
            _const_spec((1, 3 * Dv)),                      # [bk|bv|bo]
        ],
        out_specs=_batched_spec((block_b, M, Dv)),
        compiler_params=_compiler_params(vmem_limit),
    )(q0, q0h, xk, kbias, w["WkvT"], w["WoT"], w["b"])


def _mab_call_fullq(xq, xk, qmask, w, *, num_heads, block_b, vmem_limit):
    """MAB with per-batch Q projection in-kernel (ISAB stage 1)."""
    B, M, Dq = xq.shape
    _, N, Dk = xk.shape
    Dv = w["WoT"].shape[0]
    kernel = functools.partial(_mab_fullq_kernel, num_heads=num_heads)
    return pl.pallas_call(
        kernel,
        out_shape=jax.ShapeDtypeStruct((B, M, Dv), jnp.float32),
        grid=(B // block_b,),
        in_specs=[
            _batched_spec((block_b, M, Dq)),               # query-side input X (bf16)
            _batched_spec((block_b, N, Dk)),               # key-side input H (bf16)
            _batched_spec((block_b, M, 1)),                # query-row validity
            _const_spec((Dq, Dv)),                         # Wq^T
            _const_spec((Dk, 2 * Dv)),                     # [Wk|Wv]^T (1/sqrt(dh) folded into Wk)
            _const_spec((Dv, Dv)),                         # Wo^T
            _const_spec((1, 4 * Dv)),                      # [bq|bk|bv|bo]
        ],
        out_specs=_batched_spec((block_b, M, Dv)),
        compiler_params=_compiler_params(vmem_limit),
    )(xq, xk, qmask, w["WqT"], w["WkvT"], w["WoT"], w["b"])


# ---------------------------------------------------------------------------
# Host-side packing and block sizing
# ---------------------------------------------------------------------------
def _pack_mab_weights(p, num_heads, include_q):
    """Transpose weights, fuse K|V, fold 1/sqrt(dh) into K, pack the biases."""
    Dv = p["Wo"].shape[0]
    scale = 1.0 / math.sqrt(Dv // num_heads)
    w = {
        "WkvT": jnp.concatenate([(p["Wk"] * scale).T, p["Wv"].T],
                                axis=1).astype(jnp.bfloat16),
        "WoT": p["Wo"].T.astype(jnp.bfloat16),
    }
    biases = [p["bk"] * scale, p["bv"], p["bo"]]
    if include_q:
        w["WqT"] = p["Wq"].T.astype(jnp.bfloat16)
        biases = [p["bq"]] + biases
    w["b"] = jnp.concatenate(biases, axis=1).astype(jnp.float32)
    return w


def _vmem_limit_bytes():
    """Per-generation VMEM budget: ~75% of physical VMEM per TensorCore
    (v7x: 64 MiB -> 48 MiB; v5e/v6e: 128 MiB -> 96 MiB)."""
    try:
        return (pltpu.get_tpu_info().vmem_capacity_bytes * 3) // 4
    except Exception:
        return 48 << 20                                    # safe on every generation


def _stage_bytes_per_batch(m_q, n_k, d_q, d_k, d_v, num_heads):
    """Rough per-batch-element VMEM footprint of one grid step (double-buffered
    streamed blocks + dominant in-kernel intermediates)."""
    stream = 2 * (n_k * d_k * 2 + m_q * d_q * 2 + m_q * d_v * 4 + n_k * 4 + m_q * 4)
    kv = n_k * 2 * d_v * 4 + 2 * (2 * n_k * d_v * 2)       # f32 KV + bf16 K/V (+head copies)
    scores = 3 * num_heads * m_q * n_k * 4                 # dots / exp / softmax (f32)
    attn = num_heads * m_q * n_k * 2 + 3 * m_q * d_v * 4   # A bf16, O/H/Ho f32
    return stream + kv + scores + attn


def _pick_block_b(B, bytes_per_batch, budget_bytes):
    """Largest divisor of B fitting the VMEM budget; prefer a grid length that is
    even and >= 2 so the "parallel" batch axis splits across v7x TensorCores."""
    divisors = [d for d in range(1, B + 1) if B % d == 0]
    fits = [d for d in divisors if d * bytes_per_batch <= budget_bytes] or [1]
    for ok in (lambda d: B // d >= 2 and (B // d) % 2 == 0,
               lambda d: B // d >= 2):
        pref = [d for d in fits if ok(d)]
        if pref:
            return max(pref)
    return max(fits)


def isab_forward(X, mask, params, *, num_heads, block_b=None):
    """ISAB forward. X: (B, N, dim_in) f32; mask: (B, N) f32 in {0,1} marking valid
    set elements (all-ones == unmasked ISAB). Returns (B, N, dim_out) f32."""
    B, N, Din = X.shape
    I = params["I"]                                        # (num_inds, dim_out)
    M, Dv = I.shape
    dh = Dv // num_heads

    m0, m1 = params["mab0"], params["mab1"]
    w0 = _pack_mab_weights(m0, num_heads, include_q=False)
    w1 = _pack_mab_weights(m1, num_heads, include_q=True)

    # Hoist the batch-invariant seed projection (and its head split) to the host.
    q0 = (I @ m0["Wq"].T + m0["bq"]).astype(jnp.float32)             # (M, Dv)
    q0h = jnp.stack([q0[:, h * dh:(h + 1) * dh] for h in range(num_heads)],
                    axis=0).astype(jnp.bfloat16)                     # (H, M, dh)

    Xb = X.astype(jnp.bfloat16)                            # bf16 MXU operands
    kbias = jnp.where(mask > 0.5, 0.0, -1e30).astype(jnp.float32).reshape(B, 1, N)
    qmask = mask.astype(jnp.float32).reshape(B, N, 1)

    vmem_limit = _vmem_limit_bytes()
    if block_b is None:
        per_b = max(_stage_bytes_per_batch(M, N, Dv, Din, Dv, num_heads),
                    _stage_bytes_per_batch(N, M, Din, Dv, Dv, num_heads))
        block_b = _pick_block_b(B, per_b, int(vmem_limit * 0.6))
    assert B % block_b == 0

    # Stage 0: H = MAB0(I, X)   (induced points attend over the masked set)
    h0 = _mab_call_preq(q0, q0h, Xb, kbias, w0, num_heads=num_heads,
                        block_b=block_b, vmem_limit=vmem_limit)

    # Stage 1: out = MAB1(X, H) (set elements attend over the induced summary)
    return _mab_call_fullq(Xb, h0, qmask, w1, num_heads=num_heads,
                           block_b=block_b, vmem_limit=vmem_limit)


# ---------------------------------------------------------------------------
# Pure-JAX reference mirroring the PyTorch module (f32, exact softmax)
# ---------------------------------------------------------------------------
def _mab_reference(Qin, Kin, mask_a, mask_b, p, num_heads):
    Q = Qin @ p["Wq"].T + p["bq"]
    K = Kin @ p["Wk"].T + p["bk"]
    V = Kin @ p["Wv"].T + p["bv"]
    B, M, Dv = Q.shape
    N = K.shape[1]
    dh = Dv // num_heads
    Qh = Q.reshape(B, M, num_heads, dh)
    Kh = K.reshape(B, N, num_heads, dh)
    Vh = V.reshape(B, N, num_heads, dh)
    dots = jnp.einsum("bmhd,bnhd->bhmn", Qh, Kh) / math.sqrt(dh)
    valid = (jnp.einsum("bmo,bno->bmn", mask_a, mask_b) == 1.0)[:, None]
    dots = jnp.where(valid, dots, -jnp.finfo(jnp.float32).max)
    A = jax.nn.softmax(dots, axis=-1)
    O = jnp.einsum("bhmn,bnhd->bmhd", A, Vh).reshape(B, M, Dv)
    H = Q + O
    return H + jax.nn.relu(H @ p["Wo"].T + p["bo"])


def isab_reference(X, mask, params, *, num_heads):
    B, N, _ = X.shape
    I = params["I"]
    M = I.shape[0]
    Ib = jnp.broadcast_to(I[None], (B,) + I.shape)
    m_col = mask.reshape(B, N, 1)
    ones_i = jnp.ones((B, M, 1), jnp.float32)
    h = _mab_reference(Ib, X, ones_i, m_col, params["mab0"], num_heads)
    return _mab_reference(X, h, m_col, ones_i, params["mab1"], num_heads)


# ---------------------------------------------------------------------------
# Parameter construction (PyTorch-style init, deterministic)
# ---------------------------------------------------------------------------
def _linear(key, out_dim, in_dim):
    kw, kb = jax.random.split(key)
    bound = 1.0 / math.sqrt(in_dim)
    W = jax.random.uniform(kw, (out_dim, in_dim), jnp.float32, -bound, bound)
    b = jax.random.uniform(kb, (1, out_dim), jnp.float32, -bound, bound)
    return W, b


def make_isab_params(key, dim_in, dim_out, num_inds):
    ks = jax.random.split(key, 9)
    xav = math.sqrt(6.0 / (num_inds + dim_out))
    I = jax.random.uniform(ks[0], (num_inds, dim_out), jnp.float32, -xav, xav)

    def mab(kq, kk, kv, ko, dim_Q, dim_K, dim_V):
        Wq, bq = _linear(kq, dim_V, dim_Q)
        Wk, bk = _linear(kk, dim_V, dim_K)
        Wv, bv = _linear(kv, dim_V, dim_K)
        Wo, bo = _linear(ko, dim_V, dim_V)
        return {"Wq": Wq, "bq": bq, "Wk": Wk, "bk": bk,
                "Wv": Wv, "bv": bv, "Wo": Wo, "bo": bo}

    return {
        "I": I,
        "mab0": mab(ks[1], ks[2], ks[3], ks[4], dim_out, dim_in, dim_out),
        "mab1": mab(ks[5], ks[6], ks[7], ks[8], dim_in, dim_out, dim_out),
    }


if __name__ == "__main__":
    B, N = 4, 16
    dim_in, dim_out = 32, 32
    num_heads, num_inds = 4, 8

    key = jax.random.PRNGKey(0)
    kp, kx = jax.random.split(key)
    params = make_isab_params(kp, dim_in, dim_out, num_inds)
    X = jax.random.normal(kx, (B, N, dim_in), jnp.float32)

    # Per-element validity mask over X ({0,1}); last batch element has
    # 6 of its 16 set elements masked out.
    mask = jnp.ones((B, N), jnp.float32)
    mask = mask.at[B - 1, 10:].set(0.0)

    out = isab_forward(X, mask, params, num_heads=num_heads)
    out = jax.block_until_ready(out)

    ref = isab_reference(X, mask, params, num_heads=num_heads)
    assert out.shape == (B, N, dim_out)
    max_err = float(jnp.max(jnp.abs(out - ref)))
    # bf16 MXU operands + approx reciprocal vs. an f32 reference -> modest tolerance.
    assert jnp.allclose(out, ref, atol=5e-2, rtol=5e-2), max_err

    print("KERNEL_OK")
</pallas_src>

<mosaic_0001>
module attributes {stable_mosaic.version = 11 : i64} {
  func.func @_mab_preq_kernel(%arg0: i32, %arg1: memref<8x32xf32, #tpu.memory_space<vmem>>, %arg2: memref<4x8x8xbf16, #tpu.memory_space<vmem>>, %arg3: memref<2x16x32xbf16, #tpu.memory_space<vmem>>, %arg4: memref<2x1x16xf32, #tpu.memory_space<vmem>>, %arg5: memref<32x64xbf16, #tpu.memory_space<vmem>>, %arg6: memref<32x32xbf16, #tpu.memory_space<vmem>>, %arg7: memref<1x96xf32, #tpu.memory_space<vmem>>, %arg8: memref<2x8x32xbf16, #tpu.memory_space<vmem>>) attributes {dimension_semantics = [#tpu.dimension_semantics<parallel>], iteration_bounds = array<i64: 2>, scalar_prefetch = 0 : i64, scratch_operands = 0 : i64, tpu.core_type = #tpu.core_type<tc>, window_params = [{pipeline_mode = #tpu.pipeline_mode<synchronous>, transform_indices = @transform_0, window_bounds = array<i64: 8, 32>}, {pipeline_mode = #tpu.pipeline_mode<synchronous>, transform_indices = @transform_1, window_bounds = array<i64: 4, 8, 8>}, {transform_indices = @transform_2, window_bounds = array<i64: 2, 16, 32>}, {transform_indices = @transform_3, window_bounds = array<i64: 2, 1, 16>}, {pipeline_mode = #tpu.pipeline_mode<synchronous>, transform_indices = @transform_4, window_bounds = array<i64: 32, 64>}, {pipeline_mode = #tpu.pipeline_mode<synchronous>, transform_indices = @transform_5, window_bounds = array<i64: 32, 32>}, {pipeline_mode = #tpu.pipeline_mode<synchronous>, transform_indices = @transform_6, window_bounds = array<i64: 1, 96>}, {transform_indices = @transform_7, window_bounds = array<i64: 2, 8, 32>}]} {
    %c0 = arith.constant 0 : index
    %c0_0 = arith.constant 0 : index
    %0 = vector.load %arg1[%c0, %c0_0] : memref<8x32xf32, #tpu.memory_space<vmem>>, vector<8x32xf32>
    %1 = vector.shape_cast %0 : vector<8x32xf32> to vector<1x8x32xf32>
    %2 = vector.shape_cast %1 : vector<1x8x32xf32> to vector<1x8x32xf32>
    %3 = vector.broadcast %2 : vector<1x8x32xf32> to vector<2x8x32xf32>
    %c0_1 = arith.constant 0 : index
    %c0_2 = arith.constant 0 : index
    %c0_3 = arith.constant 0 : index
    %4 = vector.load %arg2[%c0_1, %c0_2, %c0_3] : memref<4x8x8xbf16, #tpu.memory_space<vmem>>, vector<4x8x8xbf16>
    %5 = vector.shape_cast %4 : vector<4x8x8xbf16> to vector<4x1x8x8xbf16>
    %6 = vector.shape_cast %5 : vector<4x1x8x8xbf16> to vector<4x1x8x8xbf16>
    %7 = vector.broadcast %6 : vector<4x1x8x8xbf16> to vector<4x2x8x8xbf16>
    %8 = vector.shape_cast %7 : vector<4x2x8x8xbf16> to vector<8x8x8xbf16>
    %c0_4 = arith.constant 0 : index
    %c0_5 = arith.constant 0 : index
    %9 = vector.load %arg7[%c0_4, %c0_5] : memref<1x96xf32, #tpu.memory_space<vmem>>, vector<1x96xf32>
    %c0_6 = arith.constant 0 : index
    %c0_7 = arith.constant 0 : index
    %c0_8 = arith.constant 0 : index
    %10 = vector.load %arg3[%c0_6, %c0_7, %c0_8] : memref<2x16x32xbf16, #tpu.memory_space<vmem>>, vector<2x16x32xbf16>
    %c0_9 = arith.constant 0 : index
    %c0_10 = arith.constant 0 : index
    %c0_11 = arith.constant 0 : index
    %11 = vector.load %arg4[%c0_9, %c0_10, %c0_11] : memref<2x1x16xf32, #tpu.memory_space<vmem>>, vector<2x1x16xf32>
    %c0_12 = arith.constant 0 : index
    %c0_13 = arith.constant 0 : index
    %12 = vector.load %arg5[%c0_12, %c0_13] : memref<32x64xbf16, #tpu.memory_space<vmem>>, vector<32x64xbf16>
    %13 = vector.extract_strided_slice %9 {offsets = [0, 0], sizes = [1, 64], strides = [1, 1]} : vector<1x96xf32> to vector<1x64xf32>
    %c0_14 = arith.constant 0 : index
    %c0_15 = arith.constant 0 : index
    %14 = vector.load %arg6[%c0_14, %c0_15] : memref<32x32xbf16, #tpu.memory_space<vmem>>, vector<32x32xbf16>
    %15 = vector.extract_strided_slice %9 {offsets = [0, 64], sizes = [1, 32], strides = [1, 1]} : vector<1x96xf32> to vector<1x32xf32>
    %16 = vector.shape_cast %10 : vector<2x16x32xbf16> to vector<32x32xbf16>
    %cst = arith.constant dense<0.000000e+00> : vector<32x64xf32>
    %17 = tpu.matmul %16, %12, %cst {dimension_numbers = #tpu.dot_dimension_numbers<[1], [0], [0], [1], [0, 0, 1, 1], [], []>} : vector<32x32xbf16>, vector<32x64xbf16>, vector<32x64xf32> -> vector<32x64xf32>
    %18 = vector.broadcast %13 : vector<1x64xf32> to vector<32x64xf32>
    %19 = arith.addf %17, %18 : vector<32x64xf32>
    %20 = vector.extract_strided_slice %19 {offsets = [0, 0], sizes = [32, 32], strides = [1, 1]} : vector<32x64xf32> to vector<32x32xf32>
    %21 = arith.truncf %20 : vector<32x32xf32> to vector<32x32xbf16>
    %22 = vector.shape_cast %21 : vector<32x32xbf16> to vector<2x16x32xbf16>
    %23 = vector.extract_strided_slice %22 {offsets = [0, 0, 0], sizes = [2, 16, 8], strides = [1, 1, 1]} : vector<2x16x32xbf16> to vector<2x16x8xbf16>
    %24 = vector.extract_strided_slice %22 {offsets = [0, 0, 8], sizes = [2, 16, 8], strides = [1, 1, 1]} : vector<2x16x32xbf16> to vector<2x16x8xbf16>
    %25 = vector.extract_strided_slice %22 {offsets = [0, 0, 16], sizes = [2, 16, 8], strides = [1, 1, 1]} : vector<2x16x32xbf16> to vector<2x16x8xbf16>
    %26 = vector.extract_strided_slice %22 {offsets = [0, 0, 24], sizes = [2, 16, 8], strides = [1, 1, 1]} : vector<2x16x32xbf16> to vector<2x16x8xbf16>
    %27 = tpu.concatenate %23, %24, %25, %26 in 0 : vector<2x16x8xbf16>, vector<2x16x8xbf16>, vector<2x16x8xbf16>, vector<2x16x8xbf16> -> vector<8x16x8xbf16>
    %28 = vector.extract_strided_slice %19 {offsets = [0, 32], sizes = [32, 32], strides = [1, 1]} : vector<32x64xf32> to vector<32x32xf32>
    %29 = arith.truncf %28 : vector<32x32xf32> to vector<32x32xbf16>
    %30 = vector.shape_cast %29 : vector<32x32xbf16> to vector<2x16x32xbf16>
    %31 = vector.extract_strided_slice %30 {offsets = [0, 0, 0], sizes = [2, 16, 8], strides = [1, 1, 1]} : vector<2x16x32xbf16> to vector<2x16x8xbf16>
    %32 = vector.extract_strided_slice %30 {offsets = [0, 0, 8], sizes = [2, 16, 8], strides = [1, 1, 1]} : vector<2x16x32xbf16> to vector<2x16x8xbf16>
    %33 = vector.extract_strided_slice %30 {offsets = [0, 0, 16], sizes = [2, 16, 8], strides = [1, 1, 1]} : vector<2x16x32xbf16> to vector<2x16x8xbf16>
    %34 = vector.extract_strided_slice %30 {offsets = [0, 0, 24], sizes = [2, 16, 8], strides = [1, 1, 1]} : vector<2x16x32xbf16> to vector<2x16x8xbf16>
    %35 = tpu.concatenate %31, %32, %33, %34 in 0 : vector<2x16x8xbf16>, vector<2x16x8xbf16>, vector<2x16x8xbf16>, vector<2x16x8xbf16> -> vector<8x16x8xbf16>
    "tpu.trace_start"() <{level = 10 : i32, message = "bmd,bnd->bmn"}> : () -> ()
    %cst_16 = arith.constant dense<0.000000e+00> : vector<8x8x16xf32>
    %36 = tpu.matmul %8, %27, %cst_16 {dimension_numbers = #tpu.dot_dimension_numbers<[2], [2], [1], [1], [0, 0, 0, 1, 1, 1], [0], [0]>} : vector<8x8x8xbf16>, vector<8x16x8xbf16>, vector<8x8x16xf32> -> vector<8x8x16xf32>
    "tpu.trace_stop"() : () -> ()
    %37 = vector.shape_cast %11 : vector<2x1x16xf32> to vector<1x2x1x16xf32>
    %38 = vector.shape_cast %37 : vector<1x2x1x16xf32> to vector<1x2x1x16xf32>
    %39 = vector.broadcast %38 : vector<1x2x1x16xf32> to vector<4x2x1x16xf32>
    %40 = vector.shape_cast %39 : vector<4x2x1x16xf32> to vector<8x1x16xf32>
    %41 = vector.broadcast %40 : vector<8x1x16xf32> to vector<8x8x16xf32>
    %42 = arith.addf %36, %41 : vector<8x8x16xf32>
    %cst_17 = arith.constant dense<0xFF800000> : vector<8x8xf32>
    %43 = vector.multi_reduction <maximumf>, %42, %cst_17 [2] : vector<8x8x16xf32> to vector<8x8xf32>
    %44 = vector.shape_cast %43 : vector<8x8xf32> to vector<8x8x1xf32>
    %45 = vector.broadcast %44 : vector<8x8x1xf32> to vector<8x8x16xf32>
    %46 = arith.subf %42, %45 : vector<8x8x16xf32>
    %47 = math.exp %46 : vector<8x8x16xf32>
    %cst_18 = arith.constant dense<0.000000e+00> : vector<8x8xf32>
    %48 = vector.multi_reduction <add>, %47, %cst_18 [2] : vector<8x8x16xf32> to vector<8x8xf32>
    %49 = vector.shape_cast %48 : vector<8x8xf32> to vector<8x8x1xf32>
    %50 = tpu.reciprocal %49 {approx = true} : vector<8x8x1xf32> -> vector<8x8x1xf32>
    %51 = vector.broadcast %50 : vector<8x8x1xf32> to vector<8x8x16xf32>
    %52 = arith.mulf %47, %51 : vector<8x8x16xf32>
    %53 = arith.truncf %52 : vector<8x8x16xf32> to vector<8x8x16xbf16>
    "tpu.trace_start"() <{level = 10 : i32, message = "bmn,bnd->bmd"}> : () -> ()
    %cst_19 = arith.constant dense<0.000000e+00> : vector<8x8x8xf32>
    %54 = tpu.matmul %53, %35, %cst_19 {dimension_numbers = #tpu.dot_dimension_numbers<[2], [1], [1], [2], [0, 0, 0, 1, 1, 2], [0], [0]>} : vector<8x8x16xbf16>, vector<8x16x8xbf16>, vector<8x8x8xf32> -> vector<8x8x8xf32>
    "tpu.trace_stop"() : () -> ()
    %55 = vector.extract_strided_slice %54 {offsets = [0, 0, 0], sizes = [2, 8, 8], strides = [1, 1, 1]} : vector<8x8x8xf32> to vector<2x8x8xf32>
    %56 = vector.extract_strided_slice %54 {offsets = [2, 0, 0], sizes = [2, 8, 8], strides = [1, 1, 1]} : vector<8x8x8xf32> to vector<2x8x8xf32>
    %57 = vector.extract_strided_slice %54 {offsets = [4, 0, 0], sizes = [2, 8, 8], strides = [1, 1, 1]} : vector<8x8x8xf32> to vector<2x8x8xf32>
    %58 = vector.extract_strided_slice %54 {offsets = [6, 0, 0], sizes = [2, 8, 8], strides = [1, 1, 1]} : vector<8x8x8xf32> to vector<2x8x8xf32>
    %59 = tpu.concatenate %55, %56, %57, %58 in 2 : vector<2x8x8xf32>, vector<2x8x8xf32>, vector<2x8x8xf32>, vector<2x8x8xf32> -> vector<2x8x32xf32>
    %60 = arith.addf %3, %59 : vector<2x8x32xf32>
    %61 = vector.shape_cast %60 : vector<2x8x32xf32> to vector<16x32xf32>
    %62 = arith.truncf %61 : vector<16x32xf32> to vector<16x32xbf16>
    %cst_20 = arith.constant dense<0.000000e+00> : vector<16x32xf32>
    %63 = tpu.matmul %62, %14, %cst_20 {dimension_numbers = #tpu.dot_dimension_numbers<[1], [0], [0], [1], [0, 0, 1, 1], [], []>} : vector<16x32xbf16>, vector<32x32xbf16>, vector<16x32xf32> -> vector<16x32xf32>
    %64 = vector.broadcast %15 : vector<1x32xf32> to vector<16x32xf32>
    %65 = arith.addf %63, %64 : vector<16x32xf32>
    %66 = vector.shape_cast %65 : vector<16x32xf32> to vector<2x8x32xf32>
    %cst_21 = arith.constant 0.000000e+00 : f32
    %67 = vector.broadcast %cst_21 : f32 to vector<2x8x32xf32>
    %68 = arith.maximumf %66, %67 : vector<2x8x32xf32>
    %69 = arith.addf %60, %68 : vector<2x8x32xf32>
    %70 = arith.truncf %69 : vector<2x8x32xf32> to vector<2x8x32xbf16>
    %c0_22 = arith.constant 0 : index
    %c0_23 = arith.constant 0 : index
    %c0_24 = arith.constant 0 : index
    %71 = vector.load %arg8[%c0_22, %c0_23, %c0_24] : memref<2x8x32xbf16, #tpu.memory_space<vmem>>, vector<2x8x32xbf16>
    tpu.vector_store %arg8[%c0_22, %c0_23, %c0_24], %70 {strides = array<i32>} : memref<2x8x32xbf16, #tpu.memory_space<vmem>>, vector<2x8x32xbf16>,
    return
  }
  func.func @transform_0(%arg0: i32) -> (i32, i32) {
    %c0_i32 = arith.constant 0 : i32
    %c0_i32_0 = arith.constant 0 : i32
    %c0_i32_1 = arith.constant 0 : i32
    return %c0_i32, %c0_i32_0 : i32, i32
  }
  func.func @transform_1(%arg0: i32) -> (i32, i32, i32) {
    %c0_i32 = arith.constant 0 : i32
    %c0_i32_0 = arith.constant 0 : i32
    %c0_i32_1 = arith.constant 0 : i32
    %c0_i32_2 = arith.constant 0 : i32
    return %c0_i32, %c0_i32_0, %c0_i32_1 : i32, i32, i32
  }
  func.func @transform_2(%arg0: i32) -> (i32, i32, i32) {
    %c0_i32 = arith.constant 0 : i32
    %c0_i32_0 = arith.constant 0 : i32
    %c0_i32_1 = arith.constant 0 : i32
    return %arg0, %c0_i32, %c0_i32_0 : i32, i32, i32
  }
  func.func @transform_3(%arg0: i32) -> (i32, i32, i32) {
    %c0_i32 = arith.constant 0 : i32
    %c0_i32_0 = arith.constant 0 : i32
    %c0_i32_1 = arith.constant 0 : i32
    return %arg0, %c0_i32, %c0_i32_0 : i32, i32, i32
  }
  func.func @transform_4(%arg0: i32) -> (i32, i32) {
    %c0_i32 = arith.constant 0 : i32
    %c0_i32_0 = arith.constant 0 : i32
    %c0_i32_1 = arith.constant 0 : i32
    return %c0_i32, %c0_i32_0 : i32, i32
  }
  func.func @transform_5(%arg0: i32) -> (i32, i32) {
    %c0_i32 = arith.constant 0 : i32
    %c0_i32_0 = arith.constant 0 : i32
    %c0_i32_1 = arith.constant 0 : i32
    return %c0_i32, %c0_i32_0 : i32, i32
  }
  func.func @transform_6(%arg0: i32) -> (i32, i32) {
    %c0_i32 = arith.constant 0 : i32
    %c0_i32_0 = arith.constant 0 : i32
    %c0_i32_1 = arith.constant 0 : i32
    return %c0_i32, %c0_i32_0 : i32, i32
  }
  func.func @transform_7(%arg0: i32) -> (i32, i32, i32) {
    %c0_i32 = arith.constant 0 : i32
    %c0_i32_0 = arith.constant 0 : i32
    %c0_i32_1 = arith.constant 0 : i32
    return %arg0, %c0_i32, %c0_i32_0 : i32, i32, i32
  }
}

</mosaic_0001>

<llo_original>
// kernel: tpu_custom_call.1
$region0: #{tpu_custom_call.1}
  #allocation0 [shape = 'u32[]', space=smem, size = 0x4, offset = 0x4, fixed_abs, tag = 'smem constant byte address 0x4 - core index']
  #allocation1 [shape = 'u32[72,128]{1,0:T(1,128)}', space=vmem, size = 0x9000, scoped, tag = 'internal scratch']
  %s0 = inlined_call_operand.hbm [shape: f32[8,32], index: 0, kind: input, shape index: {}]
  %s1 = inlined_call_operand.hbm [shape: bf16[4,8,8], index: 1, kind: input, shape index: {}]
  %s2 = inlined_call_operand.hbm [shape: bf16[4,16,32], index: 2, kind: input, shape index: {}]
  %s3 = inlined_call_operand.hbm [shape: f32[4,1,16], index: 3, kind: input, shape index: {}]
  %s4 = inlined_call_operand.hbm [shape: bf16[32,64], index: 4, kind: input, shape index: {}]
  %s5 = inlined_call_operand.hbm [shape: bf16[32,32], index: 5, kind: input, shape index: {}]
  %s6 = inlined_call_operand.vmem [shape: f32[1,96], index: 6, kind: input, shape index: {}]
  %s7 = inlined_call_operand.hbm [shape: bf16[4,8,32], index: 7, kind: output, shape index: {}]
  %s8 = sld [smem:[#allocation0]]
  $region85: #{tpu_custom_call.1} parent=0
    _
  %s10 = ssub.s32 1, %s8
  %s11 = scalar_select 0, %s10, %s8
  $region1: #{tpu_custom_call.1} parent=0
    #allocation2 [shape = 'u8[4096]{0}', space=vmem, size = 0x1000, scoped, tag = 'input window, operand 0, single buffered']
    #allocation3 [shape = 's32[2]{0}', space=sflag, size = 0x8, scoped, tag = 'scoped memory for tpu_custom_call.1']
    #allocation4 [shape = 's32[2]{0}', space=sflag, size = 0x8, scoped, tag = 'scoped memory for tpu_custom_call.1']
    #allocation5 [shape = 'u8[8192]{0}', space=vmem, size = 0x2000, scoped, tag = 'input window, operand 1, single buffered']
    #allocation6 [shape = 's32[1]{0}', space=sflag, size = 0x4, scoped, tag = 'scoped memory for tpu_custom_call.1']
    #allocation7 [shape = 'u8[16384]{0}', space=vmem, size = 0x4000, scoped, tag = 'input window, operand 2']
    #allocation8 [shape = 'u8[2048]{0}', space=vmem, size = 0x800, scoped, tag = 'input window, operand 3']
    #allocation9 [shape = 'u8[8192]{0}', space=vmem, size = 0x2000, scoped, tag = 'input window, operand 4, single buffered']
    #allocation10 [shape = 'u8[8192]{0}', space=vmem, size = 0x2000, scoped, tag = 'input window, operand 5, single buffered']
    #allocation11 [shape = 's32[1]{0}', space=sflag, size = 0x4, scoped, tag = 'scoped memory for tpu_custom_call.1']
    #allocation12 [shape = 'u8[8192]{0}', space=vmem, size = 0x2000, scoped, tag = 'output window, operand 0']
    %12 = vsyncpa [#allocation3], 0
    %13 = vsyncpa [#allocation6], 0
    %14 = vsyncpa [#allocation11], 0
    %15 = vsyncpa [#allocation4], 0
    %s16 = scalar_lea.sflag [#allocation4], 1
    %17 = vsyncpa %s16, 0
    loop: start=0, step=1, limit=4
    $region2: #{tpu_custom_call.1} parent=1 // loop_pre_header
      _
    $region3: #{tpu_custom_call.1} parent=1 // loop_header
      %s19 = sphi 0, %s23
      %p20 = scmp.ge.s32.totalorder %s19, 4
      %s27 = sphi 0, %s27
      %s29 = sphi 0, %s27
      %s30 = sphi 0, %s29
      %s44 = sphi 0, %s30
      %s48 = sphi 0, %s48
      %s50 = sphi 0, %s48
      %s51 = sphi 0, %s50
      %s65 = sphi 0, %s51
      %s71 = sphi 0, %s73
      %s74 = sphi 0, %s71
      %s75 = sphi 0, %s74
      %s91 = sphi 0, %s75
      %s97 = sphi 0, %s99
      %s100 = sphi 0, %s97
      %s101 = sphi 0, %s100
      %s117 = sphi 0, %s101
      %s121 = sphi 0, %s121
      %s123 = sphi 0, %s121
      %s124 = sphi 0, %s123
      %s138 = sphi 0, %s124
      %s142 = sphi 0, %s142
      %s144 = sphi 0, %s142
      %s145 = sphi 0, %s144
      %s159 = sphi 0, %s145
      %s163 = sphi 0, %s163
      %s165 = sphi 0, %s163
      %s166 = sphi 0, %s165
      %s180 = sphi 0, %s166
      %s186 = sphi 0, %s188
      %s189 = sphi 0, %s186
      %s190 = sphi 0, %s189
      %s206 = sphi 0, %s190
    $region4: #{tpu_custom_call.1} parent=1 // loop_header_branch
      %22 = sbr.rel (%p20) target = $region8
    $region5: #{tpu_custom_call.1} parent=1 // loop_body
      %s24 = ssub.s32 %s19, 1
      %s25 = ssub.s32 %s19, 2
      %s26 = sadd.s32 %s19, 1
      %s28 = sadd.s32 %s27, 1
      %p31 = scmp.eq.s32.totalorder %s19, 1
      %p32 = scmp.ne.s32.totalorder %s27, %s29
      %p33 = scmp.eq.s32.totalorder %s19, 0
      %p34 = por %p32, %p33
      %p35 = scmp.ne.s32.totalorder %s27, %s29
      %p36 = scmp.eq.s32.totalorder %s24, 1
      %p37 = por %p35, %p36
      %p38 = scmp.ne.s32.totalorder %s29, %s30
      %p39 = scmp.eq.s32.totalorder %s24, 0
      %p40 = por %p38, %p39
      %p41 = scmp.ne.s32.totalorder %s29, %s30
      %p42 = scmp.eq.s32.totalorder %s25, 1
      %p43 = por %p41, %p42
      %p45 = scmp.ne.s32.totalorder %s30, %s44
      %p46 = scmp.eq.s32.totalorder %s25, 0
      %p47 = por %p45, %p46
      %s49 = sadd.s32 %s48, 1
      %p52 = scmp.eq.s32.totalorder %s19, 1
      %p53 = scmp.ne.s32.totalorder %s48, %s50
      %p54 = scmp.eq.s32.totalorder %s19, 0
      %p55 = por %p53, %p54
      %p56 = scmp.ne.s32.totalorder %s48, %s50
      %p57 = scmp.eq.s32.totalorder %s24, 1
      %p58 = por %p56, %p57
      %p59 = scmp.ne.s32.totalorder %s50, %s51
      %p60 = scmp.eq.s32.totalorder %s24, 0
      %p61 = por %p59, %p60
      %p62 = scmp.ne.s32.totalorder %s50, %s51
      %p63 = scmp.eq.s32.totalorder %s25, 1
      %p64 = por %p62, %p63
      %p66 = scmp.ne.s32.totalorder %s51, %s65
      %p67 = scmp.eq.s32.totalorder %s25, 0
      %p68 = por %p66, %p67
      %s69 = ssub.s32 %s19, %s26
      %p70 = scmp.eq.s32.totalorder %s69, 0
      %s72 = sadd.s32 %s71, 1
      %s73 = scalar_select %p70, %s71, %s72
      %p76 = pneg %p70
      %p77 = scmp.eq.s32.totalorder %s19, 1
      %p78 = por %p76, %p77
      %p79 = scmp.ne.s32.totalorder %s71, %s74
      %p80 = scmp.eq.s32.totalorder %s19, 0
      %p81 = por %p79, %p80
      %p82 = scmp.ne.s32.totalorder %s71, %s74
      %p83 = scmp.eq.s32.totalorder %s24, 1
      %p84 = por %p82, %p83
      %p85 = scmp.ne.s32.totalorder %s74, %s75
      %p86 = scmp.eq.s32.totalorder %s24, 0
      %p87 = por %p85, %p86
      %p88 = scmp.ne.s32.totalorder %s74, %s75
      %p89 = scmp.eq.s32.totalorder %s25, 1
      %p90 = por %p88, %p89
      %p92 = scmp.ne.s32.totalorder %s75, %s91
      %p93 = scmp.eq.s32.totalorder %s25, 0
      %p94 = por %p92, %p93
      %s95 = ssub.s32 %s19, %s26
      %p96 = scmp.eq.s32.totalorder %s95, 0
      %s98 = sadd.s32 %s97, 1
      %s99 = scalar_select %p96, %s97, %s98
      %p102 = pneg %p96
      %p103 = scmp.eq.s32.totalorder %s19, 1
      %p104 = por %p102, %p103
      %p105 = scmp.ne.s32.totalorder %s97, %s100
      %p106 = scmp.eq.s32.totalorder %s19, 0
      %p107 = por %p105, %p106
      %p108 = scmp.ne.s32.totalorder %s97, %s100
      %p109 = scmp.eq.s32.totalorder %s24, 1
      %p110 = por %p108, %p109
      %p111 = scmp.ne.s32.totalorder %s100, %s101
      %p112 = scmp.eq.s32.totalorder %s24, 0
      %p113 = por %p111, %p112
      %p114 = scmp.ne.s32.totalorder %s100, %s101
      %p115 = scmp.eq.s32.totalorder %s25, 1
      %p116 = por %p114, %p115
      %p118 = scmp.ne.s32.totalorder %s101, %s117
      %p119 = scmp.eq.s32.totalorder %s25, 0
      %p120 = por %p118, %p119
      %s122 = sadd.s32 %s121, 1
      %p125 = scmp.eq.s32.totalorder %s19, 1
      %p126 = scmp.ne.s32.totalorder %s121, %s123
      %p127 = scmp.eq.s32.totalorder %s19, 0
      %p128 = por %p126, %p127
      %p129 = scmp.ne.s32.totalorder %s121, %s123
      %p130 = scmp.eq.s32.totalorder %s24, 1
      %p131 = por %p129, %p130
      %p132 = scmp.ne.s32.totalorder %s123, %s124
      %p133 = scmp.eq.s32.totalorder %s24, 0
      %p134 = por %p132, %p133
      %p135 = scmp.ne.s32.totalorder %s123, %s124
      %p136 = scmp.eq.s32.totalorder %s25, 1
      %p137 = por %p135, %p136
      %p139 = scmp.ne.s32.totalorder %s124, %s138
      %p140 = scmp.eq.s32.totalorder %s25, 0
      %p141 = por %p139, %p140
      %s143 = sadd.s32 %s142, 1
      %p146 = scmp.eq.s32.totalorder %s19, 1
      %p147 = scmp.ne.s32.totalorder %s142, %s144
      %p148 = scmp.eq.s32.totalorder %s19, 0
      %p149 = por %p147, %p148
      %p150 = scmp.ne.s32.totalorder %s142, %s144
      %p151 = scmp.eq.s32.totalorder %s24, 1
      %p152 = por %p150, %p151
      %p153 = scmp.ne.s32.totalorder %s144, %s145
      %p154 = scmp.eq.s32.totalorder %s24, 0
      %p155 = por %p153, %p154
      %p156 = scmp.ne.s32.totalorder %s144, %s145
      %p157 = scmp.eq.s32.totalorder %s25, 1
      %p158 = por %p156, %p157
      %p160 = scmp.ne.s32.totalorder %s145, %s159
      %p161 = scmp.eq.s32.totalorder %s25, 0
      %p162 = por %p160, %p161
      %s164 = sadd.s32 %s163, 1
      %p167 = scmp.eq.s32.totalorder %s19, 1
      %p168 = scmp.ne.s32.totalorder %s163, %s165
      %p169 = scmp.eq.s32.totalorder %s19, 0
      %p170 = por %p168, %p169
      %p171 = scmp.ne.s32.totalorder %s163, %s165
      %p172 = scmp.eq.s32.totalorder %s24, 1
      %p173 = por %p171, %p172
      %p174 = scmp.ne.s32.totalorder %s165, %s166
      %p175 = scmp.eq.s32.totalorder %s24, 0
      %p176 = por %p174, %p175
      %p177 = scmp.ne.s32.totalorder %s165, %s166
      %p178 = scmp.eq.s32.totalorder %s25, 1
      %p179 = por %p177, %p178
      %p181 = scmp.ne.s32.totalorder %s166, %s180
      %p182 = scmp.eq.s32.totalorder %s25, 0
      %p183 = por %p181, %p182
      %s184 = ssub.s32 %s19, %s26
      %p185 = scmp.eq.s32.totalorder %s184, 0
      %s187 = sadd.s32 %s186, 1
      %s188 = scalar_select %p185, %s186, %s187
      %p191 = pneg %p185
      %p192 = scmp.eq.s32.totalorder %s19, 1
      %p193 = por %p191, %p192
      %p194 = scmp.ne.s32.totalorder %s186, %s189
      %p195 = scmp.eq.s32.totalorder %s19, 0
      %p196 = por %p194, %p195
      %p197 = scmp.ne.s32.totalorder %s186, %s189
      %p198 = scmp.eq.s32.totalorder %s24, 1
      %p199 = por %p197, %p198
      %p200 = scmp.ne.s32.totalorder %s189, %s190
      %p201 = scmp.eq.s32.totalorder %s24, 0
      %p202 = por %p200, %p201
      %p203 = scmp.ne.s32.totalorder %s189, %s190
      %p204 = scmp.eq.s32.totalorder %s25, 1
      %p205 = por %p203, %p204
      %p207 = scmp.ne.s32.totalorder %s190, %s206
      %p208 = scmp.eq.s32.totalorder %s25, 0
      %p209 = por %p207, %p208
      %p210 = scmp.le.s32.totalorder 1, %s19
      %p211 = scmp.lt.s32.totalorder %s19, 3
      %p212 = pnand %p210, %p211
      %p213 = pneg %p212
      // Predicated region
      $region9: #{tpu_custom_call.1} parent=5 // pred_check
        _
      $region10: #{tpu_custom_call.1} parent=5 // pred_check_branch
        %215 = sbr.rel (%p212) target = $region12
      $region11: #{tpu_custom_call.1} parent=5 // pred_region
        %s216 = ssub.s32 %s19, 1
        // Predicated region
        $region13: #{tpu_custom_call.1} parent=11 // pred_check
          %p217 = pneg %p40
        $region14: #{tpu_custom_call.1} parent=11 // pred_check_branch
          %219 = sbr.rel (%p217) target = $region16
        $region15: #{tpu_custom_call.1} parent=11 // pred_region
          %221 = vsyncadd [#allocation3], 0
          %s223 = sshll.u32 %s0, 4
          %s224 = int_to_ptr.hbm [resolvable:$true] %s223
          %s225 = sshll.u32 [#allocation2], 4
          %s226 = int_to_ptr.vmem [resolvable:$true] %s225
          %228 = dma.hbm_to_vmem [thread:$0]  %s224, 128, %s226, [#allocation3]
        $region16: #{tpu_custom_call.1} parent=11 // pred_fallthru
          _
        // Predicated region
        $region17: #{tpu_custom_call.1} parent=11 // pred_check
          %p229 = pneg %p61
        $region18: #{tpu_custom_call.1} parent=11 // pred_check_branch
          %231 = sbr.rel (%p229) target = $region20
        $region19: #{tpu_custom_call.1} parent=11 // pred_region
          %233 = vsyncadd [#allocation6], 0
          %s234 = sshll.u32 %s1, 4
          %s235 = int_to_ptr.hbm [resolvable:$true] %s234
          %s236 = sshll.u32 [#allocation5], 4
          %s237 = int_to_ptr.vmem [resolvable:$true] %s236
          %242 = dma.hbm_to_vmem [thread:$0]  %s235, 256, %s237, [#allocation6], 64, 64, 4
        $region20: #{tpu_custom_call.1} parent=11 // pred_fallthru
          _
        // Predicated region
        $region21: #{tpu_custom_call.1} parent=11 // pred_check
          %p243 = pneg %p134
        $region22: #{tpu_custom_call.1} parent=11 // pred_check_branch
          %245 = sbr.rel (%p243) target = $region24
        $region23: #{tpu_custom_call.1} parent=11 // pred_region
          %247 = vsyncadd [#allocation6], 0
          %s248 = sshll.u32 %s4, 4
          %s249 = int_to_ptr.hbm [resolvable:$true] %s248
          %s250 = sshll.u32 [#allocation9], 4
          %s251 = int_to_ptr.vmem [resolvable:$true] %s250
          %256 = dma.hbm_to_vmem [thread:$0]  %s249, 256, %s251, [#allocation6], 64, 64, 4
        $region24: #{tpu_custom_call.1} parent=11 // pred_fallthru
          _
        // Predicated region
        $region25: #{tpu_custom_call.1} parent=11 // pred_check
          %p257 = pneg %p155
        $region26: #{tpu_custom_call.1} parent=11 // pred_check_branch
          %259 = sbr.rel (%p257) target = $region28
        $region27: #{tpu_custom_call.1} parent=11 // pred_region
          %261 = vsyncadd [#allocation11], 0
          %s262 = sshll.u32 %s5, 4
          %s263 = int_to_ptr.hbm [resolvable:$true] %s262
          %s264 = sshll.u32 [#allocation10], 4
          %s265 = int_to_ptr.vmem [resolvable:$true] %s264
          %270 = dma.hbm_to_vmem [thread:$0]  %s263, 256, %s265, [#allocation11], 64, 64, 4
        $region28: #{tpu_custom_call.1} parent=11 // pred_fallthru
          _
        // Predicated region
        $region29: #{tpu_custom_call.1} parent=11 // pred_check
          %p271 = pneg %p176
        $region30: #{tpu_custom_call.1} parent=11 // pred_check_branch
          %273 = sbr.rel (%p271) target = $region32
        $region31: #{tpu_custom_call.1} parent=11 // pred_region
          _
        $region32: #{tpu_custom_call.1} parent=11 // pred_fallthru
          _
      $region12: #{tpu_custom_call.1} parent=5 // pred_fallthru
        _
      %p274 = scmp.lt.s32.totalorder %s19, 2
      // Predicated region
      $region33: #{tpu_custom_call.1} parent=5 // pred_check
        %p275 = pneg %p274
      $region34: #{tpu_custom_call.1} parent=5 // pred_check_branch
        %277 = sbr.rel (%p275) target = $region36
      $region35: #{tpu_custom_call.1} parent=5 // pred_region
        // Predicated region
        $region37: #{tpu_custom_call.1} parent=35 // pred_check
          %p278 = pneg %p81
        $region38: #{tpu_custom_call.1} parent=35 // pred_check_branch
          %280 = sbr.rel (%p278) target = $region40
        $region39: #{tpu_custom_call.1} parent=35 // pred_region
          %s281 = sand.u32 %s19, 1
          %s282 = scalar_lea.sflag [#allocation3], %s281
          %s283 = sand.u32 %s71, 1
          %s284 = smul.addr %s283, 16
          %s285 = scalar_lea.vmem [#allocation7], %s284
          %s286 = smul.u32 2, %s19
          %288 = vsyncadd %s282, 0
          %s289 = smul.addr %s286, 2
          %s290 = smul.addr %s289, 4
          %s291 = scalar_lea.hbm %s2, %s290
          %s292 = sshll.u32 %s291, 4
          %s293 = int_to_ptr.hbm [resolvable:$true] %s292
          %s294 = sshll.u32 %s285, 4
          %s295 = int_to_ptr.vmem [resolvable:$true] %s294
          %300 = dma.hbm_to_vmem [thread:$0]  %s293, 256, %s295, %s282, 64, 64, 4
        $region40: #{tpu_custom_call.1} parent=35 // pred_fallthru
          _
        // Predicated region
        $region41: #{tpu_custom_call.1} parent=35 // pred_check
          %p301 = pneg %p107
        $region42: #{tpu_custom_call.1} parent=35 // pred_check_branch
          %303 = sbr.rel (%p301) target = $region44
        $region43: #{tpu_custom_call.1} parent=35 // pred_region
          %s304 = sand.u32 %s19, 1
          %s305 = scalar_lea.sflag [#allocation3], %s304
          %s306 = sand.u32 %s97, 1
          %s307 = smul.addr %s306, 2
          %s308 = scalar_lea.vmem [#allocation8], %s307
          %s309 = smul.u32 2, %s19
          %311 = vsyncadd %s305, 0
          %s312 = scalar_lea.hbm %s3, %s309
          %s313 = sshll.u32 %s312, 4
          %s314 = int_to_ptr.hbm [resolvable:$true] %s313
          %s315 = sshll.u32 %s308, 4
          %s316 = int_to_ptr.vmem [resolvable:$true] %s315
          %321 = dma.hbm_to_vmem [thread:$0]  %s314, 32, %s316, %s305, 16, 16, 1
        $region44: #{tpu_custom_call.1} parent=35 // pred_fallthru
          _
      $region36: #{tpu_custom_call.1} parent=5 // pred_fallthru
        _
      %p322 = scmp.le.s32.totalorder 1, %s19
      %p323 = scmp.lt.s32.totalorder %s19, 3
      %p324 = pnand %p322, %p323
      %p325 = pneg %p324
      // Predicated region
      $region45: #{tpu_custom_call.1} parent=5 // pred_check
        _
      $region46: #{tpu_custom_call.1} parent=5 // pred_check_branch
        %327 = sbr.rel (%p324) target = $region48
      $region47: #{tpu_custom_call.1} parent=5 // pred_region
        %s328 = ssub.s32 %s19, 1
        // Predicated region
        $region49: #{tpu_custom_call.1} parent=47 // pred_check
          %p329 = pneg %p40
        $region50: #{tpu_custom_call.1} parent=47 // pred_check_branch
          %331 = sbr.rel (%p329) target = $region52
        $region51: #{tpu_custom_call.1} parent=47 // pred_region
          %333 = dma.done [#allocation3], 128
        $region52: #{tpu_custom_call.1} parent=47 // pred_fallthru
          _
        // Predicated region
        $region53: #{tpu_custom_call.1} parent=47 // pred_check
          %p334 = pneg %p61
        $region54: #{tpu_custom_call.1} parent=47 // pred_check_branch
          %336 = sbr.rel (%p334) target = $region56
        $region55: #{tpu_custom_call.1} parent=47 // pred_region
          %338 = dma.done [#allocation6], 256
        $region56: #{tpu_custom_call.1} parent=47 // pred_fallthru
          _
        %s339 = sand.u32 %s24, 1
        %s340 = scalar_lea.sflag [#allocation3], %s339
        %s341 = sand.u32 %s74, 1
        %s342 = smul.addr %s341, 16
        %s343 = scalar_lea.vmem [#allocation7], %s342
        // Predicated region
        $region57: #{tpu_custom_call.1} parent=47 // pred_check
          %p344 = pneg %p87
        $region58: #{tpu_custom_call.1} parent=47 // pred_check_branch
          %346 = sbr.rel (%p344) target = $region60
        $region59: #{tpu_custom_call.1} parent=47 // pred_region
          %348 = dma.done %s340, 256
        $region60: #{tpu_custom_call.1} parent=47 // pred_fallthru
          _
        %s349 = sand.u32 %s24, 1
        %s350 = scalar_lea.sflag [#allocation3], %s349
        %s351 = sand.u32 %s100, 1
        %s352 = smul.addr %s351, 2
        %s353 = scalar_lea.vmem [#allocation8], %s352
        // Predicated region
        $region61: #{tpu_custom_call.1} parent=47 // pred_check
          %p354 = pneg %p113
        $region62: #{tpu_custom_call.1} parent=47 // pred_check_branch
          %356 = sbr.rel (%p354) target = $region64
        $region63: #{tpu_custom_call.1} parent=47 // pred_region
          %358 = dma.done %s350, 32
        $region64: #{tpu_custom_call.1} parent=47 // pred_fallthru
          _
        // Predicated region
        $region65: #{tpu_custom_call.1} parent=47 // pred_check
          %p359 = pneg %p134
        $region66: #{tpu_custom_call.1} parent=47 // pred_check_branch
          %361 = sbr.rel (%p359) target = $region68
        $region67: #{tpu_custom_call.1} parent=47 // pred_region
          %363 = dma.done [#allocation6], 256
        $region68: #{tpu_custom_call.1} parent=47 // pred_fallthru
          _
        // Predicated region
        $region69: #{tpu_custom_call.1} parent=47 // pred_check
          %p364 = pneg %p155
        $region70: #{tpu_custom_call.1} parent=47 // pred_check_branch
          %366 = sbr.rel (%p364) target = $region72
        $region71: #{tpu_custom_call.1} parent=47 // pred_region
          %368 = dma.done [#allocation11], 256
        $region72: #{tpu_custom_call.1} parent=47 // pred_fallthru
          _
        %p369 = pneg %p40
        %p370 = pneg %p37
        %p371 = pneg %p61
        %p372 = pneg %p58
        %s373 = sand.u32 %s24, 1
        %s374 = scalar_lea.sflag [#allocation3], %s373
        %s375 = sand.u32 %s74, 1
        %s376 = smul.addr %s375, 16
        %s377 = scalar_lea.vmem [#allocation7], %s376
        %p378 = pneg %p87
        %p379 = pneg %p84
        %s380 = sand.u32 %s24, 1
        %s381 = scalar_lea.sflag [#allocation3], %s380
        %s382 = sand.u32 %s100, 1
        %s383 = smul.addr %s382, 2
        %s384 = scalar_lea.vmem [#allocation8], %s383
        %p385 = pneg %p113
        %p386 = pneg %p110
        %p387 = pneg %p134
        %p388 = pneg %p131
        %p389 = pneg %p155
        %p390 = pneg %p152
        %p391 = pneg %p176
        %p392 = pneg %p173
        %p393 = pneg %p202
        %p394 = pneg %p199
        %s395 = sand.u32 %s189, 1
        %s396 = scalar_lea.sflag [#allocation4], %s395
        %s397 = sand.u32 %s189, 1
        %s398 = smul.addr %s397, 8
        %s399 = scalar_lea.vmem [#allocation12], %s398
        %s400 = smul.u32 2, %s24
        %s401 = smul.u32 2, %s24
        %s402 = smul.u32 2, %s24
        %v404 = vld [vmem:[#allocation2] sm:$0xff]
        %v405 = vld [vmem:[#allocation5] sm:$0xf]
        %v406 = vld [vmem:[#allocation5 + $0x4] sm:$0xf]
        %v407 = vld [vmem:[#allocation5 + $0x8] sm:$0xf]
        %v408 = vld [vmem:[#allocation5 + $0xc] sm:$0xf]
        %v409 = vld [vmem:[%s6] sm:$0x1]
        %v410 = vld [vmem:[%s343] sm:$0xf]
        %v411 = vld [vmem:[%s343 + $0x4] sm:$0xf]
        %v412 = vld [vmem:[%s343 + $0x8] sm:$0xf]
        %v413 = vld [vmem:[%s343 + $0xc] sm:$0xf]
        %v414 = vld [vmem:[%s353] sm:$0x1]
        %v415 = vld [vmem:[%s353 + $0x1] sm:$0x1]
        %v416 = vld [vmem:[#allocation9] sm:$0xf]
        %v417 = vld [vmem:[#allocation9 + $0x4] sm:$0xf]
        %v418 = vld [vmem:[#allocation9 + $0x8] sm:$0xf]
        %v419 = vld [vmem:[#allocation9 + $0xc] sm:$0xf]
        %v420 = vld [vmem:[#allocation10] sm:$0xf]
        %v421 = vld [vmem:[#allocation10 + $0x4] sm:$0xf]
        %v422 = vld [vmem:[#allocation10 + $0x8] sm:$0xf]
        %v423 = vld [vmem:[#allocation10 + $0xc] sm:$0xf]
        %v425 = vperm.slane %v409, 0
        %v431 = vunpack.c.l.b16 %v410
        %v432 = vunpack.c.l.b16 %v411
        %v433 = vunpack.c.l.b16 %v412
        %v434 = vunpack.c.l.b16 %v413
        %v435 = vpack.c.b16 %v432, %v431
        %v436 = vpack.c.b16 %v434, %v433
        %v441 = vunpack.c.l.b16 %v416
        %v442 = vunpack.c.l.b16 %v417
        %v443 = vunpack.c.l.b16 %v418
        %v444 = vunpack.c.l.b16 %v419
        %v445 = vpack.c.b16 %v442, %v441
        %v446 = vpack.c.b16 %v444, %v443
        %vm449 = vcmask 261120
        %v451 = vsel %vm449, %v435, 0
        %v454 = vsel %vm449, %v436, 0
        %456 = vmatpush.bf16.msra.mxu0 0
        %457 = vmatpush.bf16.msra.mxu0 0
        %458 = vmatpush.bf16.msra.mxu0 0
        %459 = vmatpush.bf16.msra.mxu0 0
        %460 = vmatpush.bf16.msra.mxu0 0
        %461 = vmatpush.bf16.msra.mxu0 0
        %462 = vmatpush.bf16.msra.mxu0 %v446
        %463 = vmatpush.bf16.msra.mxu0 %v445
        %464 = vmatmul.bf16.gmra.mxu0 %v451
        %v465 = vpop.f32.mrf.mxu0
        %v466 = vadd.f32 %v425, %v465
        %v467 = vpop.f32.mrf.mxu0
        %v468 = vadd.f32 %v425, %v467
        %469 = vmatmul.bf16.gmra.mxu0 %v454
        %v470 = vpop.f32.mrf.mxu0
        %v471 = vadd.f32 %v425, %v470
        %v472 = vpop.f32.mrf.mxu0
        %v473 = vadd.f32 %v425, %v472
        %474 = vdwg.mxu0
        %v475 = vpack.c.bf16 %v466, %v466
        %v476 = vpack.c.bf16 %v468, %v468
        %v477 = vpack.c.bf16 %v471, %v471
        %v478 = vpack.c.bf16 %v473, %v473
        %483 = vrot.lane.b32.xlu0 %v475, 120
        %v484 = vpop.permute.xlu0 %483
        %485 = vrot.lane.b32.xlu0 %v476, 120
        %v486 = vpop.permute.xlu0 %485
        %487 = vrot.lane.b32.xlu0 %v477, 120
        %v488 = vpop.permute.xlu0 %487
        %489 = vrot.lane.b32.xlu0 %v478, 120
        %v490 = vpop.permute.xlu0 %489
        %491 = vrot.lane.b32.xlu0 %v475, 112
        %v492 = vpop.permute.xlu0 %491
        %493 = vrot.lane.b32.xlu0 %v476, 112
        %v494 = vpop.permute.xlu0 %493
        %495 = vrot.lane.b32.xlu0 %v477, 112
        %v496 = vpop.permute.xlu0 %495
        %497 = vrot.lane.b32.xlu0 %v478, 112
        %v498 = vpop.permute.xlu0 %497
        %499 = vrot.lane.b32.xlu0 %v475, 104
        %v500 = vpop.permute.xlu0 %499
        %501 = vrot.lane.b32.xlu0 %v476, 104
        %v502 = vpop.permute.xlu0 %501
        %503 = vrot.lane.b32.xlu0 %v477, 104
        %v504 = vpop.permute.xlu0 %503
        %505 = vrot.lane.b32.xlu0 %v478, 104
        %v506 = vpop.permute.xlu0 %505
        %v509 = vperm.slane %v414, 0
        %v510 = vperm.slane %v415, 0
        %v513 = vunpack.c.l.b16 %v475
        %v514 = vunpack.c.l.b16 %v476
        %v515 = vpack.c.b16 %v514, %v513
        %vm516 = vcmask 64512
        %v518 = vsel %vm516, %v405, 0
        %v521 = vsel %vm516, %v515, 0
        %523 = vmatpush.bf16.xpose.msra.mxu0 0
        %524 = vmatpush.bf16.xpose.msra.mxu0 0
        %525 = vmatpush.bf16.xpose.msra.mxu0 0
        %526 = vmatpush.bf16.xpose.msra.mxu0 0
        %527 = vmatpush.bf16.xpose.msra.mxu0 0
        %528 = vmatpush.bf16.xpose.msra.mxu0 0
        %529 = vmatpush.bf16.xpose.msra.mxu0 0
        %530 = vmatpush.bf16.xpose.msra.mxu0 %v521
        %531 = vmatmul.bf16.gmra.mxu0 %v518
        %v532 = vpop.f32.mrf.mxu0
        %v533 = vadd.f32 %v509, %v532
        %v534 = vpop.f32.mrf.mxu0
        %535 = vdwg.mxu0
        %v536 = vunpack.c.l.b16 %v477
        %v537 = vunpack.c.l.b16 %v478
        %v538 = vpack.c.b16 %v537, %v536
        %v540 = vsel %vm516, %v538, 0
        %542 = vmatpush.bf16.xpose.msra.mxu0 0
        %543 = vmatpush.bf16.xpose.msra.mxu0 0
        %544 = vmatpush.bf16.xpose.msra.mxu0 0
        %545 = vmatpush.bf16.xpose.msra.mxu0 0
        %546 = vmatpush.bf16.xpose.msra.mxu0 0
        %547 = vmatpush.bf16.xpose.msra.mxu0 0
        %548 = vmatpush.bf16.xpose.msra.mxu0 0
        %549 = vmatpush.bf16.xpose.msra.mxu0 %v540
        %550 = vmatmul.bf16.gmra.mxu0 %v518
        %v551 = vpop.f32.mrf.mxu0
        %v552 = vadd.f32 %v510, %v551
        %v553 = vpop.f32.mrf.mxu0
        %554 = vdwg.mxu0
        %v555 = vunpack.c.l.b16 %v484
        %v556 = vunpack.c.l.b16 %v486
        %v557 = vpack.c.b16 %v556, %v555
        %v559 = vsel %vm516, %v406, 0
        %v562 = vsel %vm516, %v557, 0
        %564 = vmatpush.bf16.xpose.msra.mxu0 0
        %565 = vmatpush.bf16.xpose.msra.mxu0 0
        %566 = vmatpush.bf16.xpose.msra.mxu0 0
        %567 = vmatpush.bf16.xpose.msra.mxu0 0
        %568 = vmatpush.bf16.xpose.msra.mxu0 0
        %569 = vmatpush.bf16.xpose.msra.mxu0 0
        %570 = vmatpush.bf16.xpose.msra.mxu0 0
        %571 = vmatpush.bf16.xpose.msra.mxu0 %v562
        %572 = vmatmul.bf16.gmra.mxu0 %v559
        %v573 = vpop.f32.mrf.mxu0
        %v574 = vadd.f32 %v509, %v573
        %v575 = vpop.f32.mrf.mxu0
        %576 = vdwg.mxu0
        %v577 = vunpack.c.l.b16 %v488
        %v578 = vunpack.c.l.b16 %v490
        %v579 = vpack.c.b16 %v578, %v577
        %v581 = vsel %vm516, %v579, 0
        %583 = vmatpush.bf16.xpose.msra.mxu0 0
        %584 = vmatpush.bf16.xpose.msra.mxu0 0
        %585 = vmatpush.bf16.xpose.msra.mxu0 0
        %586 = vmatpush.bf16.xpose.msra.mxu0 0
        %587 = vmatpush.bf16.xpose.msra.mxu0 0
        %588 = vmatpush.bf16.xpose.msra.mxu0 0
        %589 = vmatpush.bf16.xpose.msra.mxu0 0
        %590 = vmatpush.bf16.xpose.msra.mxu0 %v581
        %591 = vmatmul.bf16.gmra.mxu0 %v559
        %v592 = vpop.f32.mrf.mxu0
        %v593 = vadd.f32 %v510, %v592
        %v594 = vpop.f32.mrf.mxu0
        %595 = vdwg.mxu0
        %v596 = vunpack.c.l.b16 %v492
        %v597 = vunpack.c.l.b16 %v494
        %v598 = vpack.c.b16 %v597, %v596
        %v600 = vsel %vm516, %v407, 0
        %v603 = vsel %vm516, %v598, 0
        %605 = vmatpush.bf16.xpose.msra.mxu0 0
        %606 = vmatpush.bf16.xpose.msra.mxu0 0
        %607 = vmatpush.bf16.xpose.msra.mxu0 0
        %608 = vmatpush.bf16.xpose.msra.mxu0 0
        %609 = vmatpush.bf16.xpose.msra.mxu0 0
        %610 = vmatpush.bf16.xpose.msra.mxu0 0
        %611 = vmatpush.bf16.xpose.msra.mxu0 0
        %612 = vmatpush.bf16.xpose.msra.mxu0 %v603
        %613 = vmatmul.bf16.gmra.mxu0 %v600
        %v614 = vpop.f32.mrf.mxu0
        %v615 = vadd.f32 %v509, %v614
        %v616 = vpop.f32.mrf.mxu0
        %617 = vdwg.mxu0
        %v618 = vunpack.c.l.b16 %v496
        %v619 = vunpack.c.l.b16 %v498
        %v620 = vpack.c.b16 %v619, %v618
        %v622 = vsel %vm516, %v620, 0
        %624 = vmatpush.bf16.xpose.msra.mxu0 0
        %625 = vmatpush.bf16.xpose.msra.mxu0 0
        %626 = vmatpush.bf16.xpose.msra.mxu0 0
        %627 = vmatpush.bf16.xpose.msra.mxu0 0
        %628 = vmatpush.bf16.xpose.msra.mxu0 0
        %629 = vmatpush.bf16.xpose.msra.mxu0 0
        %630 = vmatpush.bf16.xpose.msra.mxu0 0
        %631 = vmatpush.bf16.xpose.msra.mxu0 %v622
        %632 = vmatmul.bf16.gmra.mxu0 %v600
        %v633 = vpop.f32.mrf.mxu0
        %v634 = vadd.f32 %v510, %v633
        %v635 = vpop.f32.mrf.mxu0
        %636 = vdwg.mxu0
        %v637 = vunpack.c.l.b16 %v500
        %v638 = vunpack.c.l.b16 %v502
        %v639 = vpack.c.b16 %v638, %v637
        %v641 = vsel %vm516, %v408, 0
        %v644 = vsel %vm516, %v639, 0
        %646 = vmatpush.bf16.xpose.msra.mxu0 0
        %647 = vmatpush.bf16.xpose.msra.mxu0 0
        %648 = vmatpush.bf16.xpose.msra.mxu0 0
        %649 = vmatpush.bf16.xpose.msra.mxu0 0
        %650 = vmatpush.bf16.xpose.msra.mxu0 0
        %651 = vmatpush.bf16.xpose.msra.mxu0 0
        %652 = vmatpush.bf16.xpose.msra.mxu0 0
        %653 = vmatpush.bf16.xpose.msra.mxu0 %v644
        %654 = vmatmul.bf16.gmra.mxu0 %v641
        %v655 = vpop.f32.mrf.mxu0
        %v656 = vadd.f32 %v509, %v655
        %v657 = vpop.f32.mrf.mxu0
        %658 = vdwg.mxu0
        %v659 = vunpack.c.l.b16 %v504
        %v660 = vunpack.c.l.b16 %v506
        %v661 = vpack.c.b16 %v660, %v659
        %v663 = vsel %vm516, %v661, 0
        %665 = vmatpush.bf16.xpose.msra.mxu0 0
        %666 = vmatpush.bf16.xpose.msra.mxu0 0
        %667 = vmatpush.bf16.xpose.msra.mxu0 0
        %668 = vmatpush.bf16.xpose.msra.mxu0 0
        %669 = vmatpush.bf16.xpose.msra.mxu0 0
        %670 = vmatpush.bf16.xpose.msra.mxu0 0
        %671 = vmatpush.bf16.xpose.msra.mxu0 0
        %672 = vmatpush.bf16.xpose.msra.mxu0 %v663
        %673 = vmatmul.bf16.gmra.mxu0 %v641
        %v674 = vpop.f32.mrf.mxu0
        %v675 = vadd.f32 %v510, %v674
        %v676 = vpop.f32.mrf.mxu0
        %677 = vdwg.mxu0
        %vm678 = vcmask 130048
        %v679 = vsel %vm678, %v533, -inf
        %680 = vmax.xlane.f32.xlu0 %v679
        %v681 = vpop.xlane.xlu0 %680
        %v682 = vsel %vm678, %v552, -inf
        %683 = vmax.xlane.f32.xlu0 %v682
        %v684 = vpop.xlane.xlu0 %683
        %v685 = vsel %vm678, %v574, -inf
        %686 = vmax.xlane.f32.xlu0 %v685
        %v687 = vpop.xlane.xlu0 %686
        %v688 = vsel %vm678, %v593, -inf
        %689 = vmax.xlane.f32.xlu0 %v688
        %v690 = vpop.xlane.xlu0 %689
        %v691 = vsel %vm678, %v615, -inf
        %692 = vmax.xlane.f32.xlu0 %v691
        %v693 = vpop.xlane.xlu0 %692
        %v694 = vsel %vm678, %v634, -inf
        %695 = vmax.xlane.f32.xlu0 %v694
        %v696 = vpop.xlane.xlu0 %695
        %v697 = vsel %vm678, %v656, -inf
        %698 = vmax.xlane.f32.xlu0 %v697
        %v699 = vpop.xlane.xlu0 %698
        %v700 = vsel %vm678, %v675, -inf
        %701 = vmax.xlane.f32.xlu0 %v700
        %v702 = vpop.xlane.xlu0 %701
        %v703 = vsub.f32 %v533, %v681
        %v704 = vsub.f32 %v552, %v684
        %v705 = vsub.f32 %v574, %v687
        %v706 = vsub.f32 %v593, %v690
        %v707 = vsub.f32 %v615, %v693
        %v708 = vsub.f32 %v634, %v696
        %v709 = vsub.f32 %v656, %v699
        %v710 = vsub.f32 %v675, %v702
        %v711 = vmul.f32 %v703, 1.442695
        %v712 = vpow.pop %v711
        %v713 = vmul.f32 %v704, 1.442695
        %v714 = vpow.pop %v713
        %v715 = vmul.f32 %v705, 1.442695
        %v716 = vpow.pop %v715
        %v717 = vmul.f32 %v706, 1.442695
        %v718 = vpow.pop %v717
        %v719 = vmul.f32 %v707, 1.442695
        %v720 = vpow.pop %v719
        %v721 = vmul.f32 %v708, 1.442695
        %v722 = vpow.pop %v721
        %v723 = vmul.f32 %v709, 1.442695
        %v724 = vpow.pop %v723
        %v725 = vmul.f32 %v710, 1.442695
        %v726 = vpow.pop %v725
        %v727 = vsel %vm678, %v712, 0.0
        %728 = vadd.xlane.f32.xlu0 %v727
        %v729 = vpop.xlane.xlu0 %728
        %v730 = vsel %vm678, %v714, 0.0
        %731 = vadd.xlane.f32.xlu0 %v730
        %v732 = vpop.xlane.xlu0 %731
        %v733 = vsel %vm678, %v716, 0.0
        %734 = vadd.xlane.f32.xlu0 %v733
        %v735 = vpop.xlane.xlu0 %734
        %v736 = vsel %vm678, %v718, 0.0
        %737 = vadd.xlane.f32.xlu0 %v736
        %v738 = vpop.xlane.xlu0 %737
        %v739 = vsel %vm678, %v720, 0.0
        %740 = vadd.xlane.f32.xlu0 %v739
        %v741 = vpop.xlane.xlu0 %740
        %v742 = vsel %vm678, %v722, 0.0
        %743 = vadd.xlane.f32.xlu0 %v742
        %v744 = vpop.xlane.xlu0 %743
        %v745 = vsel %vm678, %v724, 0.0
        %746 = vadd.xlane.f32.xlu0 %v745
        %v747 = vpop.xlane.xlu0 %746
        %v748 = vsel %vm678, %v726, 0.0
        %749 = vadd.xlane.f32.xlu0 %v748
        %v750 = vpop.xlane.xlu0 %749
        %v751 = vrcp.pop %v729
        %v752 = vrcp.pop %v732
        %v753 = vrcp.pop %v735
        %v754 = vrcp.pop %v738
        %v755 = vrcp.pop %v741
        %v756 = vrcp.pop %v744
        %v757 = vrcp.pop %v747
        %v758 = vrcp.pop %v750
        %v759 = vmul.f32 %v712, %v751
        %v760 = vmul.f32 %v714, %v752
        %v761 = vmul.f32 %v716, %v753
        %v762 = vmul.f32 %v718, %v754
        %v763 = vmul.f32 %v720, %v755
        %v764 = vmul.f32 %v722, %v756
        %v765 = vmul.f32 %v724, %v757
        %v766 = vmul.f32 %v726, %v758
        %v767 = vpack.c.bf16 %v759, %v759
        %v768 = vpack.c.bf16 %v760, %v760
        %v769 = vpack.c.bf16 %v761, %v761
        %v770 = vpack.c.bf16 %v762, %v762
        %v771 = vpack.c.bf16 %v763, %v763
        %v772 = vpack.c.bf16 %v764, %v764
        %v773 = vpack.c.bf16 %v765, %v765
        %v774 = vpack.c.bf16 %v766, %v766
        %775 = vrot.lane.b32.xlu0 %v515, 96
        %v776 = vpop.permute.xlu0 %775
        %v779 = vsel %vm678, %v767, 0
        %781 = vmatpush.bf16.msra.mxu0 0
        %782 = vmatpush.bf16.msra.mxu0 0
        %783 = vmatpush.bf16.msra.mxu0 0
        %784 = vmatpush.bf16.msra.mxu0 0
        %785 = vmatpush.bf16.msra.mxu0 0
        %786 = vmatpush.bf16.msra.mxu0 0
        %787 = vmatpush.bf16.msra.mxu0 0
        %788 = vmatpush.bf16.msra.mxu0 %v776
        %789 = vmatmul.bf16.gmra.mxu0 %v779
        %v790 = vpop.f32.mrf.mxu0
        %v791 = vadd.f32 0.0, %v790
        %v792 = vpop.f32.mrf.mxu0
        %793 = vdwg.mxu0
        %794 = vrot.lane.b32.xlu0 %v538, 96
        %v795 = vpop.permute.xlu0 %794
        %v798 = vsel %vm678, %v768, 0
        %800 = vmatpush.bf16.msra.mxu0 0
        %801 = vmatpush.bf16.msra.mxu0 0
        %802 = vmatpush.bf16.msra.mxu0 0
        %803 = vmatpush.bf16.msra.mxu0 0
        %804 = vmatpush.bf16.msra.mxu0 0
        %805 = vmatpush.bf16.msra.mxu0 0
        %806 = vmatpush.bf16.msra.mxu0 0
        %807 = vmatpush.bf16.msra.mxu0 %v795
        %808 = vmatmul.bf16.gmra.mxu0 %v798
        %v809 = vpop.f32.mrf.mxu0
        %v810 = vadd.f32 0.0, %v809
        %v811 = vpop.f32.mrf.mxu0
        %812 = vdwg.mxu0
        %813 = vrot.lane.b32.xlu0 %v557, 96
        %v814 = vpop.permute.xlu0 %813
        %v817 = vsel %vm678, %v769, 0
        %819 = vmatpush.bf16.msra.mxu0 0
        %820 = vmatpush.bf16.msra.mxu0 0
        %821 = vmatpush.bf16.msra.mxu0 0
        %822 = vmatpush.bf16.msra.mxu0 0
        %823 = vmatpush.bf16.msra.mxu0 0
        %824 = vmatpush.bf16.msra.mxu0 0
        %825 = vmatpush.bf16.msra.mxu0 0
        %826 = vmatpush.bf16.msra.mxu0 %v814
        %827 = vmatmul.bf16.gmra.mxu0 %v817
        %v828 = vpop.f32.mrf.mxu0
        %v829 = vadd.f32 0.0, %v828
        %v830 = vpop.f32.mrf.mxu0
        %831 = vdwg.mxu0
        %832 = vrot.lane.b32.xlu0 %v579, 96
        %v833 = vpop.permute.xlu0 %832
        %v836 = vsel %vm678, %v770, 0
        %838 = vmatpush.bf16.msra.mxu0 0
        %839 = vmatpush.bf16.msra.mxu0 0
        %840 = vmatpush.bf16.msra.mxu0 0
        %841 = vmatpush.bf16.msra.mxu0 0
        %842 = vmatpush.bf16.msra.mxu0 0
        %843 = vmatpush.bf16.msra.mxu0 0
        %844 = vmatpush.bf16.msra.mxu0 0
        %845 = vmatpush.bf16.msra.mxu0 %v833
        %846 = vmatmul.bf16.gmra.mxu0 %v836
        %v847 = vpop.f32.mrf.mxu0
        %v848 = vadd.f32 0.0, %v847
        %v849 = vpop.f32.mrf.mxu0
        %850 = vdwg.mxu0
        %851 = vrot.lane.b32.xlu0 %v598, 96
        %v852 = vpop.permute.xlu0 %851
        %v855 = vsel %vm678, %v771, 0
        %857 = vmatpush.bf16.msra.mxu0 0
        %858 = vmatpush.bf16.msra.mxu0 0
        %859 = vmatpush.bf16.msra.mxu0 0
        %860 = vmatpush.bf16.msra.mxu0 0
        %861 = vmatpush.bf16.msra.mxu0 0
        %862 = vmatpush.bf16.msra.mxu0 0
        %863 = vmatpush.bf16.msra.mxu0 0
        %864 = vmatpush.bf16.msra.mxu0 %v852
        %865 = vmatmul.bf16.gmra.mxu0 %v855
        %v866 = vpop.f32.mrf.mxu0
        %v867 = vadd.f32 0.0, %v866
        %v868 = vpop.f32.mrf.mxu0
        %869 = vdwg.mxu0
        %870 = vrot.lane.b32.xlu0 %v620, 96
        %v871 = vpop.permute.xlu0 %870
        %v874 = vsel %vm678, %v772, 0
        %876 = vmatpush.bf16.msra.mxu0 0
        %877 = vmatpush.bf16.msra.mxu0 0
        %878 = vmatpush.bf16.msra.mxu0 0
        %879 = vmatpush.bf16.msra.mxu0 0
        %880 = vmatpush.bf16.msra.mxu0 0
        %881 = vmatpush.bf16.msra.mxu0 0
        %882 = vmatpush.bf16.msra.mxu0 0
        %883 = vmatpush.bf16.msra.mxu0 %v871
        %884 = vmatmul.bf16.gmra.mxu0 %v874
        %v885 = vpop.f32.mrf.mxu0
        %v886 = vadd.f32 0.0, %v885
        %v887 = vpop.f32.mrf.mxu0
        %888 = vdwg.mxu0
        %889 = vrot.lane.b32.xlu0 %v639, 96
        %v890 = vpop.permute.xlu0 %889
        %v893 = vsel %vm678, %v773, 0
        %895 = vmatpush.bf16.msra.mxu0 0
        %896 = vmatpush.bf16.msra.mxu0 0
        %897 = vmatpush.bf16.msra.mxu0 0
        %898 = vmatpush.bf16.msra.mxu0 0
        %899 = vmatpush.bf16.msra.mxu0 0
        %900 = vmatpush.bf16.msra.mxu0 0
        %901 = vmatpush.bf16.msra.mxu0 0
        %902 = vmatpush.bf16.msra.mxu0 %v890
        %903 = vmatmul.bf16.gmra.mxu0 %v893
        %v904 = vpop.f32.mrf.mxu0
        %v905 = vadd.f32 0.0, %v904
        %v906 = vpop.f32.mrf.mxu0
        %907 = vdwg.mxu0
        %908 = vrot.lane.b32.xlu0 %v661, 96
        %v909 = vpop.permute.xlu0 %908
        %v912 = vsel %vm678, %v774, 0
        %914 = vmatpush.bf16.msra.mxu0 0
        %915 = vmatpush.bf16.msra.mxu0 0
        %916 = vmatpush.bf16.msra.mxu0 0
        %917 = vmatpush.bf16.msra.mxu0 0
        %918 = vmatpush.bf16.msra.mxu0 0
        %919 = vmatpush.bf16.msra.mxu0 0
        %920 = vmatpush.bf16.msra.mxu0 0
        %921 = vmatpush.bf16.msra.mxu0 %v909
        %922 = vmatmul.bf16.gmra.mxu0 %v912
        %v923 = vpop.f32.mrf.mxu0
        %v924 = vadd.f32 0.0, %v923
        %v925 = vpop.f32.mrf.mxu0
        %926 = vdwg.mxu0
        %929 = vrot.lane.b32.xlu0 %v829, 8
        %v930 = vpop.permute.xlu0 %929
        %931 = vrot.lane.b32.xlu0 %v848, 8
        %v932 = vpop.permute.xlu0 %931
        %937 = vrot.lane.b32.xlu0 %v867, 16
        %v938 = vpop.permute.xlu0 %937
        %939 = vrot.lane.b32.xlu0 %v886, 16
        %v940 = vpop.permute.xlu0 %939
        %945 = vrot.lane.b32.xlu0 %v905, 24
        %v946 = vpop.permute.xlu0 %945
        %947 = vrot.lane.b32.xlu0 %v924, 24
        %v948 = vpop.permute.xlu0 %947
        %v951 = vsel %vm516, %v791, %v930
        %v952 = vsel %vm516, %v810, %v932
        %v953 = vsel %vm678, %v951, %v938
        %v954 = vsel %vm678, %v952, %v940
        %vm955 = vcmask 195584
        %v956 = vsel %vm955, %v953, %v946
        %v957 = vsel %vm955, %v954, %v948
        %v958 = vadd.f32 %v404, %v956
        %v959 = vadd.f32 %v404, %v957
        %v960 = vpack.c.bf16 %v959, %v958
        %v965 = vunpack.c.l.b16 %v420
        %v966 = vunpack.c.l.b16 %v421
        %v967 = vunpack.c.l.b16 %v422
        %v968 = vunpack.c.l.b16 %v423
        %v969 = vpack.c.b16 %v966, %v965
        %v970 = vpack.c.b16 %v968, %v967
        %973 = vrot.lane.b32.xlu0 %v425, 64
        %v974 = vpop.permute.xlu0 %973
        %v977 = vsel %vm449, %v960, 0
        %979 = vmatpush.bf16.msra.mxu0 0
        %980 = vmatpush.bf16.msra.mxu0 0
        %981 = vmatpush.bf16.msra.mxu0 0
        %982 = vmatpush.bf16.msra.mxu0 0
        %983 = vmatpush.bf16.msra.mxu0 0
        %984 = vmatpush.bf16.msra.mxu0 0
        %985 = vmatpush.bf16.msra.mxu0 %v970
        %986 = vmatpush.bf16.msra.mxu0 %v969
        %987 = vmatmul.bf16.gmra.mxu0 %v977
        %v988 = vpop.f32.mrf.mxu0
        %v989 = vadd.f32 %v974, %v988
        %v990 = vpop.f32.mrf.mxu0
        %v991 = vadd.f32 %v974, %v990
        %992 = vdwg.mxu0
        %v993 = vmax.f32 %v989, 0.0
        %v994 = vmax.f32 %v991, 0.0
        %v995 = vadd.f32 %v958, %v993
        %v996 = vadd.f32 %v959, %v994
        %v997 = vpack.c.bf16 %v995, %v995
        %v998 = vpack.c.bf16 %v996, %v996
        %vm999 = vcmask 257024
        %1000 = vst.msk [vmem:[%s399] sm:$0xf] %vm999, %v997
        %1001 = vst.msk [vmem:[%s399 + $0x4] sm:$0xf] %vm999, %v998
        %s1002 = sand.u32 %s189, 1
        %s1003 = scalar_lea.sflag [#allocation4], %s1002
        %s1004 = sand.u32 %s189, 1
        %s1005 = smul.addr %s1004, 8
        %s1006 = scalar_lea.vmem [#allocation12], %s1005
        // Predicated region
        $region73: #{tpu_custom_call.1} parent=47 // pred_check
          %p1007 = pneg %p199
        $region74: #{tpu_custom_call.1} parent=47 // pred_check_branch
          %1009 = sbr.rel (%p1007) target = $region76
        $region75: #{tpu_custom_call.1} parent=47 // pred_region
          %s1010 = smul.u32 2, %s24
          %1012 = vsyncadd %s1003, 0
          %s1013 = smul.addr %s1010, 4
          %s1014 = scalar_lea.hbm %s7, %s1013
          %s1015 = sshll.u32 %s1006, 4
          %s1016 = int_to_ptr.vmem [resolvable:$true] %s1015
          %s1017 = sshll.u32 %s1014, 4
          %s1018 = int_to_ptr.hbm [resolvable:$true] %s1017
          %1023 = dma.vmem_to_hbm [thread:$0]  %s1016, 128, %s1018, %s1003, 64, 64, 4
        $region76: #{tpu_custom_call.1} parent=47 // pred_fallthru
          _
      $region48: #{tpu_custom_call.1} parent=5 // pred_fallthru
        _
      %p1024 = scmp.le.s32.totalorder 2, %s19
      // Predicated region
      $region77: #{tpu_custom_call.1} parent=5 // pred_check
        %p1025 = pneg %p1024
      $region78: #{tpu_custom_call.1} parent=5 // pred_check_branch
        %1027 = sbr.rel (%p1025) target = $region80
      $region79: #{tpu_custom_call.1} parent=5 // pred_region
        %s1028 = ssub.s32 %s19, 2
        // Predicated region
        $region81: #{tpu_custom_call.1} parent=79 // pred_check
          %p1029 = pneg %p205
        $region82: #{tpu_custom_call.1} parent=79 // pred_check_branch
          %1031 = sbr.rel (%p1029) target = $region84
        $region83: #{tpu_custom_call.1} parent=79 // pred_region
          %s1032 = sand.u32 %s190, 1
          %s1033 = scalar_lea.sflag [#allocation4], %s1032
          %s1034 = sand.u32 %s190, 1
          %s1035 = smul.addr %s1034, 8
          %s1036 = scalar_lea.vmem [#allocation12], %s1035
          %1038 = dma.done %s1033, 128
        $region84: #{tpu_custom_call.1} parent=79 // pred_fallthru
          _
      $region80: #{tpu_custom_call.1} parent=5 // pred_fallthru
        _
    $region6: #{tpu_custom_call.1} parent=1 // loop_footer
      %s23 = sadd.s32 1, %s19
    $region7: #{tpu_custom_call.1} parent=1 // loop_footer_branch
      %18 = sbr.rel target = $region3
    $region8: #{tpu_custom_call.1} parent=1 // loop_exit
      _
    %1039 = vsyncpa [#allocation3], 1
    %s1040 = scalar_lea.sflag [#allocation3], 1
    %1041 = vsyncpa %s1040, 1
    %1042 = vsyncpa [#allocation6], 1
    %1043 = vsyncpa [#allocation11], 1
    %1044 = vsyncpa [#allocation4], 1
    %s1045 = scalar_lea.sflag [#allocation4], 1
    %1046 = vsyncpa %s1045, 1

</llo_original>
